<compile_context>
chip_gen: v6e
topology: v6e:2x2x1
jax: 0.10.0
libtpu: 0.0.40
codegen_flags: <defaults>
</compile_context>

<pallas_src>
import functools

import jax
import jax.numpy as jnp
from jax.experimental import pallas as pl
from jax.experimental.pallas import tpu as pltpu


def _round_up(x, m):
    return ((x + m - 1) // m) * m


def temporal_factors_kernel(alpha_ref,               # SMEM (1, 1) f32
                            z_ref,                   # (TB, z_dim)   bf16
                            w1_ref, b1_ref,          # (z_dim, E) bf16, (1, E)  f32
                            w2_ref, b2_ref,          # (E, 2E)    bf16, (1, 2E) f32
                            w3_ref, b3_ref,          # (2E, Np)   bf16, (1, Np) f32
                            out_ref):                # (TB, Np) f32, Np = pad(2F, 128)
    alpha = alpha_ref[0, 0]

    # Linear 1 + PReLU (bf16 MXU inputs, f32 accumulation, f32 activation math)
    h1 = jnp.dot(z_ref[...], w1_ref[...], preferred_element_type=jnp.float32)
    h1 = h1 + b1_ref[...]
    h1 = jnp.where(h1 > 0, h1, alpha * h1)

    # Linear 2 + PReLU
    h2 = jnp.dot(h1.astype(w2_ref.dtype), w2_ref[...],
                 preferred_element_type=jnp.float32)
    h2 = h2 + b2_ref[...]
    h2 = jnp.where(h2 > 0, h2, alpha * h2)

    # Linear 3 (no activation) -> lane-dense 128-wide output tile
    out = jnp.dot(h2.astype(w3_ref.dtype), w3_ref[...],
                  preferred_element_type=jnp.float32)
    out_ref[...] = (out + b3_ref[...]).astype(out_ref.dtype)


@functools.partial(jax.jit, static_argnames=("factor_dim", "row_tile"))
def temporal_factors_forward(z_t, params, *, factor_dim, row_tile=128):
    """Fused 3-layer MLP; returns (weight_loc, weight_presigma)."""
    B, z_dim = z_t.shape
    two_f = 2 * factor_dim

    # --- lane-dense output: pad 2F up to a multiple of 128 with zero columns ---
    out_cols = _round_up(max(two_f, 128), 128)
    pad_cols = out_cols - two_f
    w3 = params["w3"]
    b3 = params["b3"]
    if pad_cols:
        w3 = jnp.pad(w3, ((0, 0), (0, pad_cols)))
        b3 = jnp.pad(b3, ((0, 0), (0, pad_cols)))

    # --- row tiling: pad batch to a multiple of the row tile (sublane = 8) ---
    tb = min(row_tile, _round_up(B, 8))
    b_pad = _round_up(B, tb)
    if b_pad != B:
        z_t = jnp.pad(z_t, ((0, b_pad - B), (0, 0)))
    n_tiles = b_pad // tb

    # --- bf16 MXU operands (f32 accumulation in-kernel); biases/alpha stay f32 ---
    cdt = jnp.bfloat16
    z_c = z_t.astype(cdt)
    w1 = params["w1"].astype(cdt)
    w2 = params["w2"].astype(cdt)
    w3 = w3.astype(cdt)
    b1 = params["b1"]
    b2 = params["b2"]

    # Weights/biases: full-array blocks with constant index_maps -> DMA'd once,
    # VMEM-resident across the whole grid (no per-step re-DMA).
    resident = lambda a: pl.BlockSpec(a.shape, lambda i: (0, 0))

    out = pl.pallas_call(
        temporal_factors_kernel,
        out_shape=jax.ShapeDtypeStruct((b_pad, out_cols), jnp.float32),
        grid_spec=pltpu.PrefetchScalarGridSpec(
            num_scalar_prefetch=0,
            grid=(n_tiles,),
            in_specs=[
                pl.BlockSpec(memory_space=pltpu.MemorySpace.SMEM),    # alpha (1,1)
                pl.BlockSpec((tb, z_dim), lambda i: (i, 0)),          # z rows
                resident(w1), resident(b1),
                resident(w2), resident(b2),
                resident(w3), resident(b3),
            ],
            out_specs=pl.BlockSpec((tb, out_cols), lambda i: (i, 0)),
        ),
        compiler_params=pltpu.CompilerParams(
            dimension_semantics=("parallel",),   # shard row tiles across TCs (v7x)
        ),
    )(params["alpha"], z_c, w1, b1, w2, b2, w3, b3)

    out = out[:B]
    return out[:, :factor_dim], out[:, factor_dim:two_f]


def init_params(key, factor_dim, z_dim, emission_dim):
    """Deterministic init mimicking PyTorch nn.Linear (U(-1/sqrt(fan_in), +))."""
    def linear(k, fan_in, fan_out):
        kw, kb = jax.random.split(k)
        bound = 1.0 / jnp.sqrt(jnp.float32(fan_in))
        w = jax.random.uniform(kw, (fan_in, fan_out), jnp.float32, -bound, bound)
        b = jax.random.uniform(kb, (1, fan_out), jnp.float32, -bound, bound)
        return w, b

    k1, k2, k3 = jax.random.split(key, 3)
    w1, b1 = linear(k1, z_dim, emission_dim)
    w2, b2 = linear(k2, emission_dim, 2 * emission_dim)
    w3, b3 = linear(k3, 2 * emission_dim, 2 * factor_dim)
    alpha = jnp.full((1, 1), 0.25, jnp.float32)  # nn.PReLU default slope
    # TODO(synk): lin_sigma (factor_dim -> factor_dim) exists in __init__ but is
    # unused in forward(), so it is intentionally omitted here.
    return {"w1": w1, "b1": b1, "w2": w2, "b2": b2,
            "w3": w3, "b3": b3, "alpha": alpha}


def reference_forward_bf16(z_t, params, factor_dim):
    """Pure-JAX reference mimicking the kernel's bf16/f32-acc numerics."""
    a = params["alpha"][0, 0]
    cdt = jnp.bfloat16
    h1 = jnp.dot(z_t.astype(cdt), params["w1"].astype(cdt),
                 preferred_element_type=jnp.float32) + params["b1"]
    h1 = jnp.where(h1 > 0, h1, a * h1)
    h2 = jnp.dot(h1.astype(cdt), params["w2"].astype(cdt),
                 preferred_element_type=jnp.float32) + params["b2"]
    h2 = jnp.where(h2 > 0, h2, a * h2)
    out = jnp.dot(h2.astype(cdt), params["w3"].astype(cdt),
                  preferred_element_type=jnp.float32) + params["b3"]
    return out[:, :factor_dim], out[:, factor_dim:]


def reference_forward_f32(z_t, params, factor_dim):
    """Full-precision reference (semantics check)."""
    a = params["alpha"][0, 0]
    h1 = z_t @ params["w1"] + params["b1"]
    h1 = jnp.where(h1 > 0, h1, a * h1)
    h2 = h1 @ params["w2"] + params["b2"]
    h2 = jnp.where(h2 > 0, h2, a * h2)
    out = h2 @ params["w3"] + params["b3"]
    return out[:, :factor_dim], out[:, factor_dim:]


if __name__ == "__main__":
    factor_dim, z_dim, emission_dim = 16, 32, 32
    batch = 8

    key = jax.random.PRNGKey(0)
    k_params, k_z, k_z2 = jax.random.split(key, 3)
    params = init_params(k_params, factor_dim, z_dim, emission_dim)
    z_t = jax.random.normal(k_z, (batch, z_dim), jnp.float32)

    loc, presigma = temporal_factors_forward(z_t, params, factor_dim=factor_dim)
    loc, presigma = jax.block_until_ready((loc, presigma))
    assert loc.shape == (batch, factor_dim)
    assert presigma.shape == (batch, factor_dim)

    # check against a reference with matching bf16/f32-acc numerics
    ref_loc, ref_presig = reference_forward_bf16(z_t, params, factor_dim)
    assert jnp.allclose(loc, ref_loc, atol=1e-3, rtol=1e-3)
    assert jnp.allclose(presigma, ref_presig, atol=1e-3, rtol=1e-3)

    # loose semantics check against the full-f32 reference
    f32_loc, f32_presig = reference_forward_f32(z_t, params, factor_dim)
    assert jnp.allclose(loc, f32_loc, atol=1e-1, rtol=1e-1)
    assert jnp.allclose(presigma, f32_presig, atol=1e-1, rtol=1e-1)

    # exercise batch padding + multiple row tiles on the batch grid
    z_big = jax.random.normal(k_z2, (260, z_dim), jnp.float32)
    loc_b, presig_b = temporal_factors_forward(z_big, params, factor_dim=factor_dim)
    loc_b, presig_b = jax.block_until_ready((loc_b, presig_b))
    ref_lb, ref_pb = reference_forward_bf16(z_big, params, factor_dim)
    assert loc_b.shape == (260, factor_dim)
    assert presig_b.shape == (260, factor_dim)
    assert jnp.allclose(loc_b, ref_lb, atol=1e-3, rtol=1e-3)
    assert jnp.allclose(presig_b, ref_pb, atol=1e-3, rtol=1e-3)

    print("KERNEL_OK")
</pallas_src>

<mosaic_0001>
module attributes {stable_mosaic.version = 11 : i64} {
  func.func @temporal_factors_kernel(%arg0: i32, %arg1: memref<1x1xf32, #tpu.memory_space<smem>>, %arg2: memref<8x32xbf16, #tpu.memory_space<vmem>>, %arg3: memref<32x32xbf16, #tpu.memory_space<vmem>>, %arg4: memref<1x32xf32, #tpu.memory_space<vmem>>, %arg5: memref<32x64xbf16, #tpu.memory_space<vmem>>, %arg6: memref<1x64xf32, #tpu.memory_space<vmem>>, %arg7: memref<64x128xbf16, #tpu.memory_space<vmem>>, %arg8: memref<1x128xf32, #tpu.memory_space<vmem>>, %arg9: memref<8x128xf32, #tpu.memory_space<vmem>>) attributes {dimension_semantics = [#tpu.dimension_semantics<parallel>], iteration_bounds = array<i64: 1>, scalar_prefetch = 0 : i64, scratch_operands = 0 : i64, tpu.core_type = #tpu.core_type<tc>, window_params = [{transform_indices = @transform_0, window_bounds = array<i64: 1, 1>}, {transform_indices = @transform_1, window_bounds = array<i64: 8, 32>}, {pipeline_mode = #tpu.pipeline_mode<synchronous>, transform_indices = @transform_2, window_bounds = array<i64: 32, 32>}, {pipeline_mode = #tpu.pipeline_mode<synchronous>, transform_indices = @transform_3, window_bounds = array<i64: 1, 32>}, {pipeline_mode = #tpu.pipeline_mode<synchronous>, transform_indices = @transform_4, window_bounds = array<i64: 32, 64>}, {pipeline_mode = #tpu.pipeline_mode<synchronous>, transform_indices = @transform_5, window_bounds = array<i64: 1, 64>}, {pipeline_mode = #tpu.pipeline_mode<synchronous>, transform_indices = @transform_6, window_bounds = array<i64: 64, 128>}, {pipeline_mode = #tpu.pipeline_mode<synchronous>, transform_indices = @transform_7, window_bounds = array<i64: 1, 128>}, {transform_indices = @transform_8, window_bounds = array<i64: 8, 128>}]} {
    %c0 = arith.constant 0 : index
    %c0_0 = arith.constant 0 : index
    %0 = memref.load %arg1[%c0, %c0_0] : memref<1x1xf32, #tpu.memory_space<smem>>
    %c0_1 = arith.constant 0 : index
    %c0_2 = arith.constant 0 : index
    %1 = vector.load %arg2[%c0_1, %c0_2] : memref<8x32xbf16, #tpu.memory_space<vmem>>, vector<8x32xbf16>
    %c0_3 = arith.constant 0 : index
    %c0_4 = arith.constant 0 : index
    %2 = vector.load %arg3[%c0_3, %c0_4] : memref<32x32xbf16, #tpu.memory_space<vmem>>, vector<32x32xbf16>
    %cst = arith.constant dense<0.000000e+00> : vector<8x32xf32>
    %3 = tpu.matmul %1, %2, %cst {dimension_numbers = #tpu.dot_dimension_numbers<[1], [0], [0], [1], [0, 0, 1, 1], [], []>} : vector<8x32xbf16>, vector<32x32xbf16>, vector<8x32xf32> -> vector<8x32xf32>
    %c0_5 = arith.constant 0 : index
    %c0_6 = arith.constant 0 : index
    %4 = vector.load %arg4[%c0_5, %c0_6] : memref<1x32xf32, #tpu.memory_space<vmem>>, vector<1x32xf32>
    %5 = vector.broadcast %4 : vector<1x32xf32> to vector<8x32xf32>
    %6 = arith.addf %3, %5 : vector<8x32xf32>
    %cst_7 = arith.constant 0.000000e+00 : f32
    %7 = vector.broadcast %cst_7 : f32 to vector<8x32xf32>
    %8 = arith.cmpf ogt, %6, %7 : vector<8x32xf32>
    %9 = vector.broadcast %0 : f32 to vector<8x32xf32>
    %10 = arith.mulf %9, %6 : vector<8x32xf32>
    %11 = arith.select %8, %6, %10 : vector<8x32xi1>, vector<8x32xf32>
    %12 = arith.truncf %11 : vector<8x32xf32> to vector<8x32xbf16>
    %c0_8 = arith.constant 0 : index
    %c0_9 = arith.constant 0 : index
    %13 = vector.load %arg5[%c0_8, %c0_9] : memref<32x64xbf16, #tpu.memory_space<vmem>>, vector<32x64xbf16>
    %cst_10 = arith.constant dense<0.000000e+00> : vector<8x64xf32>
    %14 = tpu.matmul %12, %13, %cst_10 {dimension_numbers = #tpu.dot_dimension_numbers<[1], [0], [0], [1], [0, 0, 1, 1], [], []>} : vector<8x32xbf16>, vector<32x64xbf16>, vector<8x64xf32> -> vector<8x64xf32>
    %c0_11 = arith.constant 0 : index
    %c0_12 = arith.constant 0 : index
    %15 = vector.load %arg6[%c0_11, %c0_12] : memref<1x64xf32, #tpu.memory_space<vmem>>, vector<1x64xf32>
    %16 = vector.broadcast %15 : vector<1x64xf32> to vector<8x64xf32>
    %17 = arith.addf %14, %16 : vector<8x64xf32>
    %cst_13 = arith.constant 0.000000e+00 : f32
    %18 = vector.broadcast %cst_13 : f32 to vector<8x64xf32>
    %19 = arith.cmpf ogt, %17, %18 : vector<8x64xf32>
    %20 = vector.broadcast %0 : f32 to vector<8x64xf32>
    %21 = arith.mulf %20, %17 : vector<8x64xf32>
    %22 = arith.select %19, %17, %21 : vector<8x64xi1>, vector<8x64xf32>
    %23 = arith.truncf %22 : vector<8x64xf32> to vector<8x64xbf16>
    %c0_14 = arith.constant 0 : index
    %c0_15 = arith.constant 0 : index
    %24 = vector.load %arg7[%c0_14, %c0_15] : memref<64x128xbf16, #tpu.memory_space<vmem>>, vector<64x128xbf16>
    %cst_16 = arith.constant dense<0.000000e+00> : vector<8x128xf32>
    %25 = tpu.matmul %23, %24, %cst_16 {dimension_numbers = #tpu.dot_dimension_numbers<[1], [0], [0], [1], [0, 0, 1, 1], [], []>} : vector<8x64xbf16>, vector<64x128xbf16>, vector<8x128xf32> -> vector<8x128xf32>
    %c0_17 = arith.constant 0 : index
    %c0_18 = arith.constant 0 : index
    %26 = vector.load %arg8[%c0_17, %c0_18] : memref<1x128xf32, #tpu.memory_space<vmem>>, vector<1x128xf32>
    %27 = vector.broadcast %26 : vector<1x128xf32> to vector<8x128xf32>
    %28 = arith.addf %25, %27 : vector<8x128xf32>
    %c0_19 = arith.constant 0 : index
    %c0_20 = arith.constant 0 : index
    %29 = vector.load %arg9[%c0_19, %c0_20] : memref<8x128xf32, #tpu.memory_space<vmem>>, vector<8x128xf32>
    tpu.vector_store %arg9[%c0_19, %c0_20], %28 {strides = array<i32>} : memref<8x128xf32, #tpu.memory_space<vmem>>, vector<8x128xf32>,
    return
  }
  func.func @transform_0(%arg0: i32) -> (i32, i32) {
    %c0_i32 = arith.constant 0 : i32
    %c0_i32_0 = arith.constant 0 : i32
    %c0_i32_1 = arith.constant 0 : i32
    return %c0_i32, %c0_i32_0 : i32, i32
  }
  func.func @transform_1(%arg0: i32) -> (i32, i32) {
    %c0_i32 = arith.constant 0 : i32
    %c0_i32_0 = arith.constant 0 : i32
    return %arg0, %c0_i32 : i32, i32
  }
  func.func @transform_2(%arg0: i32) -> (i32, i32) {
    %c0_i32 = arith.constant 0 : i32
    %c0_i32_0 = arith.constant 0 : i32
    %c0_i32_1 = arith.constant 0 : i32
    return %c0_i32, %c0_i32_0 : i32, i32
  }
  func.func @transform_3(%arg0: i32) -> (i32, i32) {
    %c0_i32 = arith.constant 0 : i32
    %c0_i32_0 = arith.constant 0 : i32
    %c0_i32_1 = arith.constant 0 : i32
    return %c0_i32, %c0_i32_0 : i32, i32
  }
  func.func @transform_4(%arg0: i32) -> (i32, i32) {
    %c0_i32 = arith.constant 0 : i32
    %c0_i32_0 = arith.constant 0 : i32
    %c0_i32_1 = arith.constant 0 : i32
    return %c0_i32, %c0_i32_0 : i32, i32
  }
  func.func @transform_5(%arg0: i32) -> (i32, i32) {
    %c0_i32 = arith.constant 0 : i32
    %c0_i32_0 = arith.constant 0 : i32
    %c0_i32_1 = arith.constant 0 : i32
    return %c0_i32, %c0_i32_0 : i32, i32
  }
  func.func @transform_6(%arg0: i32) -> (i32, i32) {
    %c0_i32 = arith.constant 0 : i32
    %c0_i32_0 = arith.constant 0 : i32
    %c0_i32_1 = arith.constant 0 : i32
    return %c0_i32, %c0_i32_0 : i32, i32
  }
  func.func @transform_7(%arg0: i32) -> (i32, i32) {
    %c0_i32 = arith.constant 0 : i32
    %c0_i32_0 = arith.constant 0 : i32
    %c0_i32_1 = arith.constant 0 : i32
    return %c0_i32, %c0_i32_0 : i32, i32
  }
  func.func @transform_8(%arg0: i32) -> (i32, i32) {
    %c0_i32 = arith.constant 0 : i32
    %c0_i32_0 = arith.constant 0 : i32
    return %arg0, %c0_i32 : i32, i32
  }
}

</mosaic_0001>

<llo_original>
// kernel: temporal_factors_forward.1
$region0: #{temporal_factors_forward.1}
  #allocation0 [shape = 'u32[]', space=smem, size = 0x4, offset = 0x4, fixed_abs, tag = 'smem constant byte address 0x4 - core index']
  #allocation1 [shape = 'u32[144,128]{1,0:T(1,128)}', space=vmem, size = 0x12000, scoped, tag = 'internal scratch']
  #allocation2 [shape = 'f32[1,1]{1,0:T(1,128)S(6)}', space=smem, size = 0x200, scoped, tag = 'scoped memory for temporal_factors_forward.1']
  %s0 = inlined_call_operand.<no memory space> [shape: f32[1,1], index: 0, kind: input, shape index: {}]
  %s1 = inlined_call_operand.vmem [shape: bf16[8,32], index: 1, kind: input, shape index: {}]
  %s2 = inlined_call_operand.vmem [shape: bf16[32,32], index: 2, kind: input, shape index: {}]
  %s3 = inlined_call_operand.vmem [shape: f32[1,32], index: 3, kind: input, shape index: {}]
  %s4 = inlined_call_operand.vmem [shape: bf16[32,64], index: 4, kind: input, shape index: {}]
  %s5 = inlined_call_operand.vmem [shape: f32[1,64], index: 5, kind: input, shape index: {}]
  %s6 = inlined_call_operand.vmem [shape: bf16[64,128], index: 6, kind: input, shape index: {}]
  %s7 = inlined_call_operand.vmem [shape: f32[1,128], index: 7, kind: input, shape index: {}]
  %s8 = inlined_call_operand.vmem [shape: f32[8,128], index: 8, kind: output, shape index: {}]
  %s9 = sld [smem:[#allocation0]]
  $region42: #{temporal_factors_forward.1} parent=0
    _
  %s11 = ssub.s32 1, %s9
  %s12 = scalar_select 0, %s11, %s9
  %13 = sst [smem:[#allocation2]] %s0
  // Predicated region
  $region2: #{temporal_factors_forward.1} parent=0 // pred_check
    _
  $region3: #{temporal_factors_forward.1} parent=0 // pred_check_branch
    %15 = sbr.rel (0) target = $region5
  $region4: #{temporal_factors_forward.1} parent=0 // pred_region
    _
  $region5: #{temporal_factors_forward.1} parent=0 // pred_fallthru
    _
  // Predicated region
  $region6: #{temporal_factors_forward.1} parent=0 // pred_check
    _
  $region7: #{temporal_factors_forward.1} parent=0 // pred_check_branch
    %17 = sbr.rel (0) target = $region9
  $region8: #{temporal_factors_forward.1} parent=0 // pred_region
    _
  $region9: #{temporal_factors_forward.1} parent=0 // pred_fallthru
    _
  // Predicated region
  $region10: #{temporal_factors_forward.1} parent=0 // pred_check
    _
  $region11: #{temporal_factors_forward.1} parent=0 // pred_check_branch
    %19 = sbr.rel (0) target = $region13
  $region12: #{temporal_factors_forward.1} parent=0 // pred_region
    _
  $region13: #{temporal_factors_forward.1} parent=0 // pred_fallthru
    _
  // Predicated region
  $region14: #{temporal_factors_forward.1} parent=0 // pred_check
    _
  $region15: #{temporal_factors_forward.1} parent=0 // pred_check_branch
    %21 = sbr.rel (0) target = $region17
  $region16: #{temporal_factors_forward.1} parent=0 // pred_region
    _
  $region17: #{temporal_factors_forward.1} parent=0 // pred_fallthru
    _
  // Predicated region
  $region18: #{temporal_factors_forward.1} parent=0 // pred_check
    _
  $region19: #{temporal_factors_forward.1} parent=0 // pred_check_branch
    %23 = sbr.rel (0) target = $region21
  $region20: #{temporal_factors_forward.1} parent=0 // pred_region
    _
  $region21: #{temporal_factors_forward.1} parent=0 // pred_fallthru
    _
  // Predicated region
  $region22: #{temporal_factors_forward.1} parent=0 // pred_check
    _
  $region23: #{temporal_factors_forward.1} parent=0 // pred_check_branch
    %25 = sbr.rel (0) target = $region25
  $region24: #{temporal_factors_forward.1} parent=0 // pred_region
    _
  $region25: #{temporal_factors_forward.1} parent=0 // pred_fallthru
    _
  // Predicated region
  $region26: #{temporal_factors_forward.1} parent=0 // pred_check
    _
  $region27: #{temporal_factors_forward.1} parent=0 // pred_check_branch
    %27 = sbr.rel (0) target = $region29
  $region28: #{temporal_factors_forward.1} parent=0 // pred_region
    _
  $region29: #{temporal_factors_forward.1} parent=0 // pred_fallthru
    _
  // Predicated region
  $region30: #{temporal_factors_forward.1} parent=0 // pred_check
    _
  $region31: #{temporal_factors_forward.1} parent=0 // pred_check_branch
    %29 = sbr.rel (0) target = $region33
  $region32: #{temporal_factors_forward.1} parent=0 // pred_region
    _
  $region33: #{temporal_factors_forward.1} parent=0 // pred_fallthru
    _
  %s31 = sld [smem:[#allocation2]]
  %v32 = vld [vmem:[%s1] sm:$0xf]
  %v33 = vld [vmem:[%s2] sm:$0xf]
  %v34 = vld [vmem:[%s2 + $0x4] sm:$0xf]
  %v35 = vld [vmem:[%s2 + $0x8] sm:$0xf]
  %v36 = vld [vmem:[%s2 + $0xc] sm:$0xf]
  %v37 = vld [vmem:[%s3] sm:$0x1]
  %v39 = vlaneseq
  %v40 = vshrl.u32 %v39, 7
  %v41 = vsub.s32 0, %v40
  %v42 = vrot.slane %v37, %v41
  %v48 = vunpack.c.l.b16 %v33
  %v49 = vunpack.c.l.b16 %v34
  %v50 = vunpack.c.l.b16 %v35
  %v51 = vunpack.c.l.b16 %v36
  %v52 = vpack.c.b16 %v49, %v48
  %v53 = vpack.c.b16 %v51, %v50
  %vm56 = vcmask 261120
  %v58 = vsel %vm56, %v32, 0
  %60 = vmatprep.subr.bf16.mxu0 0
  %61 = vmatpush1.bf16.msra.mxu0 0
  %62 = vmatprep.subr.bf16.mxu0 0
  %63 = vmatpush1.bf16.msra.mxu0 0
  %64 = vmatprep.subr.bf16.mxu0 0
  %65 = vmatpush1.bf16.msra.mxu0 0
  %66 = vmatprep.subr.bf16.mxu0 0
  %67 = vmatpush1.bf16.msra.mxu0 0
  %68 = vmatprep.subr.bf16.mxu0 0
  %69 = vmatpush1.bf16.msra.mxu0 0
  %70 = vmatprep.subr.bf16.mxu0 0
  %71 = vmatpush1.bf16.msra.mxu0 0
  %72 = vmatprep.subr.bf16.mxu0 0
  %73 = vmatpush1.bf16.msra.mxu0 %v53
  %74 = vmatprep.subr.bf16.mxu0 0
  %75 = vmatpush1.bf16.msra.mxu0 %v52
  %76 = vmatprep.subr.bf16.mxu0 0
  %77 = vmatpush2.bf16.msra.mxu0 0
  %78 = vmatprep.subr.bf16.mxu0 0
  %79 = vmatpush2.bf16.msra.mxu0 0
  %80 = vmatprep.subr.bf16.mxu0 0
  %81 = vmatpush2.bf16.msra.mxu0 0
  %82 = vmatprep.subr.bf16.mxu0 0
  %83 = vmatpush2.bf16.msra.mxu0 0
  %84 = vmatprep.subr.bf16.mxu0 0
  %85 = vmatpush2.bf16.msra.mxu0 0
  %86 = vmatprep.subr.bf16.mxu0 0
  %87 = vmatpush2.bf16.msra.mxu0 0
  %88 = vmatprep.subr.bf16.mxu0 0
  %89 = vmatpush2.bf16.msra.mxu0 0
  %90 = vmatprep.subr.bf16.mxu0 0
  %91 = vmatpush2.bf16.msra.mxu0 0
  %92 = vmatprep.mubr.bf16.mxu0 0
  %93 = vmatmul.mubr.bf16.gmra.mxu0 %v58
  %v94 = vpop.f32.mrf.mxu0
  %v95 = vadd.f32 %v42, %v94
  %v96 = vpop.f32.mrf.mxu0
  %v97 = vpop.f32.mrf.mxu0
  %v98 = vpop.f32.mrf.mxu0
  %99 = vdwg.mxu0
  %vm100 = vcmp.gt.f32.partialorder %v95, 0.0
  %v101 = vstv %s31
  %v102 = vmul.f32 %v101, %v95
  %v103 = vsel %vm100, %v95, %v102
  %v104 = vpack.c.bf16 %v103, %v103
  %v105 = vld [vmem:[%s4] sm:$0xf]
  %v106 = vld [vmem:[%s4 + $0x4] sm:$0xf]
  %v107 = vld [vmem:[%s4 + $0x8] sm:$0xf]
  %v108 = vld [vmem:[%s4 + $0xc] sm:$0xf]
  %v109 = vld [vmem:[%s5] sm:$0x1]
  %v111 = vlaneseq
  %v112 = vshrl.u32 %v111, 7
  %v113 = vsub.s32 0, %v112
  %v114 = vrot.slane %v109, %v113
  %v120 = vunpack.c.l.b16 %v105
  %v121 = vunpack.c.l.b16 %v106
  %v122 = vunpack.c.l.b16 %v107
  %v123 = vunpack.c.l.b16 %v108
  %v124 = vpack.c.b16 %v121, %v120
  %v125 = vpack.c.b16 %v123, %v122
  %v129 = vsel %vm56, %v104, 0
  %131 = vmatprep.subr.bf16.mxu0 0
  %132 = vmatpush1.bf16.msra.mxu0 0
  %133 = vmatprep.subr.bf16.mxu0 0
  %134 = vmatpush1.bf16.msra.mxu0 0
  %135 = vmatprep.subr.bf16.mxu0 0
  %136 = vmatpush1.bf16.msra.mxu0 0
  %137 = vmatprep.subr.bf16.mxu0 0
  %138 = vmatpush1.bf16.msra.mxu0 0
  %139 = vmatprep.subr.bf16.mxu0 0
  %140 = vmatpush1.bf16.msra.mxu0 0
  %141 = vmatprep.subr.bf16.mxu0 0
  %142 = vmatpush1.bf16.msra.mxu0 0
  %143 = vmatprep.subr.bf16.mxu0 0
  %144 = vmatpush1.bf16.msra.mxu0 %v125
  %145 = vmatprep.subr.bf16.mxu0 0
  %146 = vmatpush1.bf16.msra.mxu0 %v124
  %147 = vmatprep.subr.bf16.mxu0 0
  %148 = vmatpush2.bf16.msra.mxu0 0
  %149 = vmatprep.subr.bf16.mxu0 0
  %150 = vmatpush2.bf16.msra.mxu0 0
  %151 = vmatprep.subr.bf16.mxu0 0
  %152 = vmatpush2.bf16.msra.mxu0 0
  %153 = vmatprep.subr.bf16.mxu0 0
  %154 = vmatpush2.bf16.msra.mxu0 0
  %155 = vmatprep.subr.bf16.mxu0 0
  %156 = vmatpush2.bf16.msra.mxu0 0
  %157 = vmatprep.subr.bf16.mxu0 0
  %158 = vmatpush2.bf16.msra.mxu0 0
  %159 = vmatprep.subr.bf16.mxu0 0
  %160 = vmatpush2.bf16.msra.mxu0 0
  %161 = vmatprep.subr.bf16.mxu0 0
  %162 = vmatpush2.bf16.msra.mxu0 0
  %163 = vmatprep.mubr.bf16.mxu0 0
  %164 = vmatmul.mubr.bf16.gmra.mxu0 %v129
  %v165 = vpop.f32.mrf.mxu0
  %v166 = vadd.f32 %v114, %v165
  %v167 = vpop.f32.mrf.mxu0
  %v168 = vpop.f32.mrf.mxu0
  %v169 = vpop.f32.mrf.mxu0
  %170 = vdwg.mxu0
  %vm171 = vcmp.gt.f32.partialorder %v166, 0.0
  %v172 = vmul.f32 %v101, %v166
  %v173 = vsel %vm171, %v166, %v172
  %v174 = vpack.c.bf16 %v173, %v173
  %v175 = vld [vmem:[%s6] sm:$0xf]
  %v176 = vld [vmem:[%s6 + $0x4] sm:$0xf]
  %v177 = vld [vmem:[%s6 + $0x8] sm:$0xf]
  %v178 = vld [vmem:[%s6 + $0xc] sm:$0xf]
  %v179 = vld [vmem:[%s6 + $0x10] sm:$0xf]
  %v180 = vld [vmem:[%s6 + $0x14] sm:$0xf]
  %v181 = vld [vmem:[%s6 + $0x18] sm:$0xf]
  %v182 = vld [vmem:[%s6 + $0x1c] sm:$0xf]
  %v183 = vld [vmem:[%s7] sm:$0x1]
  %v185 = vlaneseq
  %v186 = vshrl.u32 %v185, 7
  %v187 = vsub.s32 0, %v186
  %v188 = vrot.slane %v183, %v187
  %v198 = vunpack.c.l.b16 %v175
  %v199 = vunpack.c.l.b16 %v176
  %v200 = vunpack.c.l.b16 %v177
  %v201 = vunpack.c.l.b16 %v178
  %v202 = vunpack.c.l.b16 %v179
  %v203 = vunpack.c.l.b16 %v180
  %v204 = vunpack.c.l.b16 %v181
  %v205 = vunpack.c.l.b16 %v182
  %v206 = vpack.c.b16 %v199, %v198
  %v207 = vpack.c.b16 %v201, %v200
  %v208 = vpack.c.b16 %v203, %v202
  %v209 = vpack.c.b16 %v205, %v204
  %vm214 = vcmask 523264
  %v216 = vsel %vm214, %v174, 0
  %218 = vmatprep.subr.bf16.mxu0 0
  %219 = vmatpush1.bf16.msra.mxu0 0
  %220 = vmatprep.subr.bf16.mxu0 0
  %221 = vmatpush1.bf16.msra.mxu0 0
  %222 = vmatprep.subr.bf16.mxu0 0
  %223 = vmatpush1.bf16.msra.mxu0 0
  %224 = vmatprep.subr.bf16.mxu0 0
  %225 = vmatpush1.bf16.msra.mxu0 0
  %226 = vmatprep.subr.bf16.mxu0 0
  %227 = vmatpush1.bf16.msra.mxu0 %v209
  %228 = vmatprep.subr.bf16.mxu0 0
  %229 = vmatpush1.bf16.msra.mxu0 %v208
  %230 = vmatprep.subr.bf16.mxu0 0
  %231 = vmatpush1.bf16.msra.mxu0 %v207
  %232 = vmatprep.subr.bf16.mxu0 0
  %233 = vmatpush1.bf16.msra.mxu0 %v206
  %234 = vmatprep.subr.bf16.mxu0 0
  %235 = vmatpush2.bf16.msra.mxu0 0
  %236 = vmatprep.subr.bf16.mxu0 0
  %237 = vmatpush2.bf16.msra.mxu0 0
  %238 = vmatprep.subr.bf16.mxu0 0
  %239 = vmatpush2.bf16.msra.mxu0 0
  %240 = vmatprep.subr.bf16.mxu0 0
  %241 = vmatpush2.bf16.msra.mxu0 0
  %242 = vmatprep.subr.bf16.mxu0 0
  %243 = vmatpush2.bf16.msra.mxu0 0
  %244 = vmatprep.subr.bf16.mxu0 0
  %245 = vmatpush2.bf16.msra.mxu0 0
  %246 = vmatprep.subr.bf16.mxu0 0
  %247 = vmatpush2.bf16.msra.mxu0 0
  %248 = vmatprep.subr.bf16.mxu0 0
  %249 = vmatpush2.bf16.msra.mxu0 0
  %250 = vmatprep.mubr.bf16.mxu0 0
  %251 = vmatmul.mubr.bf16.gmra.mxu0 %v216
  %v252 = vpop.f32.mrf.mxu0
  %v253 = vadd.f32 %v188, %v252
  %v254 = vpop.f32.mrf.mxu0
  %v255 = vpop.f32.mrf.mxu0
  %v256 = vpop.f32.mrf.mxu0
  %257 = vdwg.mxu0
  %258 = vst [vmem:[%s8] sm:$0xff] %v253
  // Predicated region
  $region34: #{temporal_factors_forward.1} parent=0 // pred_check
    _
  $region35: #{temporal_factors_forward.1} parent=0 // pred_check_branch
    %260 = sbr.rel (0) target = $region37
  $region36: #{temporal_factors_forward.1} parent=0 // pred_region
    _
  $region37: #{temporal_factors_forward.1} parent=0 // pred_fallthru
    _
  // Predicated region
  $region38: #{temporal_factors_forward.1} parent=0 // pred_check
    _
  $region39: #{temporal_factors_forward.1} parent=0 // pred_check_branch
    %262 = sbr.rel (0) target = $region41
  $region40: #{temporal_factors_forward.1} parent=0 // pred_region
    _
  $region41: #{temporal_factors_forward.1} parent=0 // pred_fallthru
    _

</llo_original>
